<compile_context>
chip_gen: v7x
topology: tpu7x:2x2x1
jax: 0.10.0
libtpu: 0.0.40
codegen_flags: <defaults>
</compile_context>

<pallas_src>
import functools

import jax
import jax.numpy as jnp
from jax.experimental import pallas as pl
from jax.experimental.pallas import tpu as pltpu

EPS = 1e-5  # nn.LayerNorm default eps


# ----------------------------- in-kernel helpers --------------------------- #

def _ln_seg(x, gamma, beta, n_seg):
    """Per-batch-segment LayerNorm.

    x: (n_seg*R, C) f32 — n_seg stacked batch elements, each normalized over
    its own (R, C) block (matches nn.LayerNorm([R-ish dims...]) per batch).
    gamma/beta: (R, C).  Statistics stay in f32; reductions are done as a lane
    reduce followed by a sublane reduce (both cheap, no whole-stack reduce).
    """
    R, C = gamma.shape
    xr = x.reshape(n_seg, R, C)
    inv_n = 1.0 / (R * C)
    mean = jnp.sum(jnp.sum(xr, axis=1, keepdims=True), axis=2, keepdims=True) * inv_n
    d = xr - mean
    var = jnp.sum(jnp.sum(d * d, axis=1, keepdims=True), axis=2, keepdims=True) * inv_n
    y = d * (jax.lax.rsqrt(var + EPS) * gamma[None]) + beta[None]
    return y.reshape(n_seg * R, C)


# --------------------------- fused per-block kernel ------------------------ #

def _fused_kernel(x_ref, wsa_ref, wsb_ref, bsa_ref, bsb_ref, wmod_ref,
                  wcha_ref, wchb_ref, bmod_ref, bcha_ref, bchb_ref,
                  lnmd_ref, lnmdo_ref, o_ref,
                  *, Bt, S, S_out, MD, MDo, mm_dtype):
    f32 = jnp.float32
    Ri = Bt * S        # stacked input rows in this block
    Ro = Bt * S_out    # stacked output rows in this block

    x = x_ref[...]                                                 # (Ri, MD) bf16

    # ---- stage 1: sequence mixing (block-diag over batch) + residual + LN ----
    # wsa = [kron(I_Bt, ws1); kron(I_Bt, wrs)]  -> single dot, shared RHS x.
    t = jnp.dot(wsa_ref[...], x, preferred_element_type=f32) + bsa_ref[...]
    h = jnp.maximum(t[0:Ri, :], 0.0).astype(mm_dtype)              # (Ri, MD)
    x_res = t[Ri:Ri + Ro, :]                                       # (Ro, MD) f32
    x_seq = jnp.dot(wsb_ref[...], h, preferred_element_type=f32) + bsb_ref[...]
    x1 = x_seq + _ln_seg(x_res,
                         lnmd_ref[0:S_out, :],
                         lnmd_ref[S_out:2 * S_out, :], Bt)          # (Ro, MD) f32

    # ---- stage 2: modality mixing (kron-expanded, lane-dense) ----
    hm = (jnp.dot(x1.astype(mm_dtype), wmod_ref[0:MD, :],
                  preferred_element_type=f32) + bmod_ref[0:1, :])
    hm = jnp.maximum(hm, 0.0).astype(mm_dtype)
    x_mod = (jnp.dot(hm, wmod_ref[MD:2 * MD, :],
                     preferred_element_type=f32) + bmod_ref[1:2, :])
    x2 = x1 + _ln_seg(x_mod,
                      lnmd_ref[2 * S_out:3 * S_out, :],
                      lnmd_ref[3 * S_out:4 * S_out, :], Bt)         # (Ro, MD) f32

    # ---- stage 3: channel mixing + residual (fused: wc1 | wrc share LHS x2) ----
    u = (jnp.dot(x2.astype(mm_dtype), wcha_ref[...],
                 preferred_element_type=f32) + bcha_ref[0:1, :])    # (Ro, MD+MDo)
    hc = jnp.maximum(u[:, 0:MD], 0.0).astype(mm_dtype)
    x_rc = u[:, MD:MD + MDo]
    x_ch = jnp.dot(hc, wchb_ref[...], preferred_element_type=f32) + bchb_ref[0:1, :]
    o_ref[...] = x_ch + _ln_seg(x_rc,
                                lnmdo_ref[0:S_out, :],
                                lnmdo_ref[S_out:2 * S_out, :], Bt)  # (Ro, MDo)


# ------------------------------- build / pack ------------------------------ #

def _choose_tiling(B, S):
    # Fill ~256 LHS rows per grid step (v6e/v7x MXU height; >=128 also fine on
    # v5e).  Only split into 2 parallel steps (for v7x's two TensorCores) when
    # each step still gets a fat tile; on v5e/v6e a single step is optimal.
    bt = min(B, max(1, 256 // max(S, 1)))
    while B % bt != 0:
        bt -= 1
    steps = B // bt
    if steps == 1 and B % 2 == 0 and (B // 2) * S >= 256:
        bt, steps = B // 2, 2
    return bt, steps


def _pack_params(p, *, S, S_out, M, D, D_out, Bt, mm_dtype):
    """One-time parameter packing (kron expansion, bias broadcast, LN slabs)."""
    f32 = jnp.float32
    MD, MDo = M * D, M * D_out
    eye_D = jnp.eye(D, dtype=f32)
    eye_M = jnp.eye(M, dtype=f32)
    eye_B = jnp.eye(Bt, dtype=f32)
    bd = lambda w: jnp.kron(eye_B, w)                  # block-diag over batch

    # stage-1 weights (block-diagonal over the Bt stacked batch elements)
    wsa = jnp.concatenate([bd(p["ws1"]), bd(p["wrs"])], axis=0).astype(mm_dtype)
    wsb = bd(p["ws2"]).astype(mm_dtype)
    bsa = jnp.concatenate([
        jnp.tile(jnp.broadcast_to(p["bs1"][:, None], (S, MD)), (Bt, 1)),
        jnp.tile(jnp.broadcast_to(p["brs"][:, None], (S_out, MD)), (Bt, 1)),
    ], axis=0)
    bsb = jnp.tile(jnp.broadcast_to(p["bs2"][:, None], (S_out, MD)), (Bt, 1))

    # stage-2: modality mix as (MD, MD) kron-expanded matmuls
    wmod = jnp.concatenate([jnp.kron(p["wm1"].T, eye_D),
                            jnp.kron(p["wm2"].T, eye_D)], axis=0).astype(mm_dtype)
    # stage-3: channel mix / residual, block-diagonal over modalities;
    # wc1 and wrc share LHS x2 so they are column-stacked into one RHS.
    wcha = jnp.concatenate([jnp.kron(eye_M, p["wc1"].T),
                            jnp.kron(eye_M, p["wrc"].T)], axis=1).astype(mm_dtype)
    wchb = jnp.kron(eye_M, p["wc2"].T).astype(mm_dtype)

    # row biases (constant per column group) as lane-dense slabs (f32)
    bmod = jnp.stack([jnp.repeat(p["bm1"], D), jnp.repeat(p["bm2"], D)], axis=0)
    bcha = jnp.concatenate([jnp.tile(p["bc1"], M), jnp.tile(p["brc"], M)])[None, :]
    bchb = jnp.tile(p["bc2"], M)[None, :]

    # LayerNorm gamma/beta slabs (f32)
    lnmd = jnp.concatenate([p["g_seq"].reshape(S_out, MD),
                            p["b_seq"].reshape(S_out, MD),
                            p["g_mod"].reshape(S_out, MD),
                            p["b_mod"].reshape(S_out, MD)], axis=0)
    lnmdo = jnp.concatenate([p["g_ch"].reshape(S_out, MDo),
                             p["b_ch"].reshape(S_out, MDo)], axis=0)

    return (wsa, wsb, bsa, bsb, wmod, wcha, wchb, bmod, bcha, bchb, lnmd, lnmdo)


def build_cube_mlp(params, *, B, S, S_out, M, D, D_out,
                   grid_steps=None, mm_dtype=jnp.bfloat16):
    """Returns a callable x -> out. Parameter packing happens ONCE, here."""
    MD, MDo = M * D, M * D_out
    if grid_steps is None:
        Bt, grid_steps = _choose_tiling(B, S)
    else:
        assert B % grid_steps == 0
        Bt = B // grid_steps

    packed = _pack_params(params, S=S, S_out=S_out, M=M, D=D, D_out=D_out,
                          Bt=Bt, mm_dtype=mm_dtype)

    kernel = functools.partial(_fused_kernel, Bt=Bt, S=S, S_out=S_out,
                               MD=MD, MDo=MDo, mm_dtype=mm_dtype)

    @jax.jit
    def forward(x, packed_args):
        # free reshape (B,S,M,D)->(B*S, M*D); bf16 cast halves the x DMA bytes
        x2d = x.reshape(B * S, MD).astype(mm_dtype)
        in_specs = [pl.BlockSpec((Bt * S, MD), lambda b: (b, 0))] + \
                   [pl.BlockSpec(a.shape, lambda b: (0, 0)) for a in packed_args]
        out = pl.pallas_call(
            kernel,
            out_shape=jax.ShapeDtypeStruct((B * S_out, MDo), jnp.float32),
            grid_spec=pltpu.PrefetchScalarGridSpec(
                num_scalar_prefetch=0,
                grid=(grid_steps,),
                in_specs=in_specs,
                out_specs=pl.BlockSpec((Bt * S_out, MDo), lambda b: (b, 0)),
            ),
            compiler_params=pltpu.CompilerParams(
                dimension_semantics=("parallel",)),   # v7x: 2 TCs split the batch
        )(x2d, *packed_args)
        return out.reshape(B, S_out, M, D_out)        # free reshape, no transpose

    return lambda x: forward(x, packed)


# ------------------------- params / reference / main ----------------------- #

def init_params(key, S, S_out, M, D, D_out):
    ks = jax.random.split(key, 22)
    n = lambda k, shape, s=0.1: s * jax.random.normal(k, shape, jnp.float32)
    return dict(
        ws1=n(ks[0], (S, S)),        bs1=n(ks[1], (S,)),
        ws2=n(ks[2], (S_out, S)),    bs2=n(ks[3], (S_out,)),
        wm1=n(ks[4], (M, M)),        bm1=n(ks[5], (M,)),
        wm2=n(ks[6], (M, M)),        bm2=n(ks[7], (M,)),
        wc1=n(ks[8], (D, D)),        bc1=n(ks[9], (D,)),
        wc2=n(ks[10], (D_out, D)),   bc2=n(ks[11], (D_out,)),
        wrs=n(ks[12], (S_out, S)),   brs=n(ks[13], (S_out,)),
        wrc=n(ks[14], (D_out, D)),   brc=n(ks[15], (D_out,)),
        g_seq=1.0 + n(ks[16], (S_out, M, D)), b_seq=n(ks[17], (S_out, M, D)),
        g_mod=1.0 + n(ks[18], (S_out, M, D)), b_mod=n(ks[19], (S_out, M, D)),
        g_ch=1.0 + n(ks[20], (S_out, M, D_out)), b_ch=n(ks[21], (S_out, M, D_out)),
    )


def reference(x, p):
    """Plain-JAX f32 replica of the PyTorch forward (for verification)."""
    linear = lambda z, w, b: jnp.einsum("...i,oi->...o", z, w) + b

    def ln(z, gamma, beta):
        mean = jnp.mean(z, axis=(1, 2, 3), keepdims=True)
        var = jnp.mean((z - mean) ** 2, axis=(1, 2, 3), keepdims=True)
        return (z - mean) * jax.lax.rsqrt(var + EPS) * gamma + beta

    xp = x.transpose(0, 2, 3, 1)                                   # (B, M, D, S)
    x_seq = linear(jnp.maximum(linear(xp, p["ws1"], p["bs1"]), 0.0),
                   p["ws2"], p["bs2"]).transpose(0, 3, 1, 2)
    x_res = linear(xp, p["wrs"], p["brs"]).transpose(0, 3, 1, 2)
    x1 = x_seq + ln(x_res, p["g_seq"], p["b_seq"])

    xp = x1.transpose(0, 1, 3, 2)                                  # (B, S_out, D, M)
    x_mod = linear(jnp.maximum(linear(xp, p["wm1"], p["bm1"]), 0.0),
                   p["wm2"], p["bm2"]).transpose(0, 1, 3, 2)
    x2 = x1 + ln(x_mod, p["g_mod"], p["b_mod"])

    x_ch = linear(jnp.maximum(linear(x2, p["wc1"], p["bc1"]), 0.0),
                  p["wc2"], p["bc2"])
    x_rc = linear(x2, p["wrc"], p["brc"])
    return x_ch + ln(x_rc, p["g_ch"], p["b_ch"])


if __name__ == "__main__":
    B, S, S_OUT, M, D, D_OUT = 2, 8, 8, 4, 32, 32

    key = jax.random.PRNGKey(0)
    kx, kp = jax.random.split(key)
    x = jax.random.normal(kx, (B, S, M, D), jnp.float32)
    params = init_params(kp, S, S_OUT, M, D, D_OUT)

    fwd = build_cube_mlp(params, B=B, S=S, S_out=S_OUT, M=M, D=D, D_out=D_OUT)
    out = jax.block_until_ready(fwd(x))
    ref = jax.block_until_ready(reference(x, params))

    assert out.shape == (B, S_OUT, M, D_OUT), out.shape
    assert bool(jnp.all(jnp.isfinite(out)))
    # bf16 matmul operands with f32 accumulation -> slightly looser tolerance
    # than the pure-f32 version.
    max_err = float(jnp.max(jnp.abs(out - ref)))
    assert jnp.allclose(out, ref, atol=3e-2, rtol=3e-2), max_err

    print("KERNEL_OK")
</pallas_src>

<mosaic_0001>
module attributes {stable_mosaic.version = 11 : i64} {
  func.func @_fused_kernel(%arg0: i32, %arg1: memref<16x128xbf16, #tpu.memory_space<vmem>>, %arg2: memref<32x16xbf16, #tpu.memory_space<vmem>>, %arg3: memref<16x16xbf16, #tpu.memory_space<vmem>>, %arg4: memref<32x128xf32, #tpu.memory_space<vmem>>, %arg5: memref<16x128xf32, #tpu.memory_space<vmem>>, %arg6: memref<256x128xbf16, #tpu.memory_space<vmem>>, %arg7: memref<128x256xbf16, #tpu.memory_space<vmem>>, %arg8: memref<128x128xbf16, #tpu.memory_space<vmem>>, %arg9: memref<2x128xf32, #tpu.memory_space<vmem>>, %arg10: memref<1x256xf32, #tpu.memory_space<vmem>>, %arg11: memref<1x128xf32, #tpu.memory_space<vmem>>, %arg12: memref<32x128xf32, #tpu.memory_space<vmem>>, %arg13: memref<16x128xf32, #tpu.memory_space<vmem>>, %arg14: memref<16x128xf32, #tpu.memory_space<vmem>>) attributes {dimension_semantics = [#tpu.dimension_semantics<parallel>], iteration_bounds = array<i64: 1>, scalar_prefetch = 0 : i64, scratch_operands = 0 : i64, tpu.core_type = #tpu.core_type<tc>, window_params = [{transform_indices = @transform_0, window_bounds = array<i64: 16, 128>}, {pipeline_mode = #tpu.pipeline_mode<synchronous>, transform_indices = @transform_1, window_bounds = array<i64: 32, 16>}, {pipeline_mode = #tpu.pipeline_mode<synchronous>, transform_indices = @transform_2, window_bounds = array<i64: 16, 16>}, {pipeline_mode = #tpu.pipeline_mode<synchronous>, transform_indices = @transform_3, window_bounds = array<i64: 32, 128>}, {pipeline_mode = #tpu.pipeline_mode<synchronous>, transform_indices = @transform_4, window_bounds = array<i64: 16, 128>}, {pipeline_mode = #tpu.pipeline_mode<synchronous>, transform_indices = @transform_5, window_bounds = array<i64: 256, 128>}, {pipeline_mode = #tpu.pipeline_mode<synchronous>, transform_indices = @transform_6, window_bounds = array<i64: 128, 256>}, {pipeline_mode = #tpu.pipeline_mode<synchronous>, transform_indices = @transform_7, window_bounds = array<i64: 128, 128>}, {pipeline_mode = #tpu.pipeline_mode<synchronous>, transform_indices = @transform_8, window_bounds = array<i64: 2, 128>}, {pipeline_mode = #tpu.pipeline_mode<synchronous>, transform_indices = @transform_9, window_bounds = array<i64: 1, 256>}, {pipeline_mode = #tpu.pipeline_mode<synchronous>, transform_indices = @transform_10, window_bounds = array<i64: 1, 128>}, {pipeline_mode = #tpu.pipeline_mode<synchronous>, transform_indices = @transform_11, window_bounds = array<i64: 32, 128>}, {pipeline_mode = #tpu.pipeline_mode<synchronous>, transform_indices = @transform_12, window_bounds = array<i64: 16, 128>}, {transform_indices = @transform_13, window_bounds = array<i64: 16, 128>}]} {
    %c0 = arith.constant 0 : index
    %c0_0 = arith.constant 0 : index
    %0 = vector.load %arg1[%c0, %c0_0] : memref<16x128xbf16, #tpu.memory_space<vmem>>, vector<16x128xbf16>
    %c0_1 = arith.constant 0 : index
    %c0_2 = arith.constant 0 : index
    %1 = vector.load %arg2[%c0_1, %c0_2] : memref<32x16xbf16, #tpu.memory_space<vmem>>, vector<32x16xbf16>
    %cst = arith.constant dense<0.000000e+00> : vector<32x128xf32>
    %2 = tpu.matmul %1, %0, %cst {dimension_numbers = #tpu.dot_dimension_numbers<[1], [0], [0], [1], [0, 0, 1, 1], [], []>} : vector<32x16xbf16>, vector<16x128xbf16>, vector<32x128xf32> -> vector<32x128xf32>
    %c0_3 = arith.constant 0 : index
    %c0_4 = arith.constant 0 : index
    %3 = vector.load %arg4[%c0_3, %c0_4] : memref<32x128xf32, #tpu.memory_space<vmem>>, vector<32x128xf32>
    %4 = arith.addf %2, %3 : vector<32x128xf32>
    %5 = vector.extract_strided_slice %4 {offsets = [0, 0], sizes = [16, 128], strides = [1, 1]} : vector<32x128xf32> to vector<16x128xf32>
    %cst_5 = arith.constant 0.000000e+00 : f32
    %6 = vector.broadcast %cst_5 : f32 to vector<16x128xf32>
    %7 = arith.maximumf %5, %6 : vector<16x128xf32>
    %8 = arith.truncf %7 : vector<16x128xf32> to vector<16x128xbf16>
    %9 = vector.extract_strided_slice %4 {offsets = [16, 0], sizes = [16, 128], strides = [1, 1]} : vector<32x128xf32> to vector<16x128xf32>
    %c0_6 = arith.constant 0 : index
    %c0_7 = arith.constant 0 : index
    %10 = vector.load %arg3[%c0_6, %c0_7] : memref<16x16xbf16, #tpu.memory_space<vmem>>, vector<16x16xbf16>
    %cst_8 = arith.constant dense<0.000000e+00> : vector<16x128xf32>
    %11 = tpu.matmul %10, %8, %cst_8 {dimension_numbers = #tpu.dot_dimension_numbers<[1], [0], [0], [1], [0, 0, 1, 1], [], []>} : vector<16x16xbf16>, vector<16x128xbf16>, vector<16x128xf32> -> vector<16x128xf32>
    %c0_9 = arith.constant 0 : index
    %c0_10 = arith.constant 0 : index
    %12 = vector.load %arg5[%c0_9, %c0_10] : memref<16x128xf32, #tpu.memory_space<vmem>>, vector<16x128xf32>
    %13 = arith.addf %11, %12 : vector<16x128xf32>
    %c0_11 = arith.constant 0 : index
    %c0_12 = arith.constant 0 : index
    %14 = vector.load %arg12[%c0_11, %c0_12] : memref<32x128xf32, #tpu.memory_space<vmem>>, vector<8x128xf32>
    %c8 = arith.constant 8 : index
    %c0_13 = arith.constant 0 : index
    %15 = vector.load %arg12[%c8, %c0_13] : memref<32x128xf32, #tpu.memory_space<vmem>>, vector<8x128xf32>
    %16 = vector.shape_cast %9 : vector<16x128xf32> to vector<2x8x128xf32>
    %cst_14 = arith.constant dense<0.000000e+00> : vector<2x128xf32>
    %17 = vector.multi_reduction <add>, %16, %cst_14 [1] : vector<2x8x128xf32> to vector<2x128xf32>
    %18 = vector.shape_cast %17 : vector<2x128xf32> to vector<2x1x128xf32>
    %cst_15 = arith.constant dense<0.000000e+00> : vector<2x1xf32>
    %19 = vector.multi_reduction <add>, %18, %cst_15 [2] : vector<2x1x128xf32> to vector<2x1xf32>
    %20 = vector.shape_cast %19 : vector<2x1xf32> to vector<2x1x1xf32>
    %cst_16 = arith.constant 9.765625E-4 : f32
    %21 = vector.broadcast %cst_16 : f32 to vector<2x1x1xf32>
    %22 = arith.mulf %20, %21 : vector<2x1x1xf32>
    %23 = vector.broadcast %22 : vector<2x1x1xf32> to vector<2x8x128xf32>
    %24 = arith.subf %16, %23 : vector<2x8x128xf32>
    %25 = arith.mulf %24, %24 : vector<2x8x128xf32>
    %cst_17 = arith.constant dense<0.000000e+00> : vector<2x128xf32>
    %26 = vector.multi_reduction <add>, %25, %cst_17 [1] : vector<2x8x128xf32> to vector<2x128xf32>
    %27 = vector.shape_cast %26 : vector<2x128xf32> to vector<2x1x128xf32>
    %cst_18 = arith.constant dense<0.000000e+00> : vector<2x1xf32>
    %28 = vector.multi_reduction <add>, %27, %cst_18 [2] : vector<2x1x128xf32> to vector<2x1xf32>
    %29 = vector.shape_cast %28 : vector<2x1xf32> to vector<2x1x1xf32>
    %cst_19 = arith.constant 9.765625E-4 : f32
    %30 = vector.broadcast %cst_19 : f32 to vector<2x1x1xf32>
    %31 = arith.mulf %29, %30 : vector<2x1x1xf32>
    %cst_20 = arith.constant 9.99999974E-6 : f32
    %32 = vector.broadcast %cst_20 : f32 to vector<2x1x1xf32>
    %33 = arith.addf %31, %32 : vector<2x1x1xf32>
    %34 = math.rsqrt %33 : vector<2x1x1xf32>
    %35 = vector.shape_cast %14 : vector<8x128xf32> to vector<1x8x128xf32>
    %36 = vector.broadcast %34 : vector<2x1x1xf32> to vector<2x8x128xf32>
    %37 = vector.broadcast %35 : vector<1x8x128xf32> to vector<2x8x128xf32>
    %38 = arith.mulf %36, %37 : vector<2x8x128xf32>
    %39 = arith.mulf %24, %38 : vector<2x8x128xf32>
    %40 = vector.shape_cast %15 : vector<8x128xf32> to vector<1x8x128xf32>
    %41 = vector.broadcast %40 : vector<1x8x128xf32> to vector<2x8x128xf32>
    %42 = arith.addf %39, %41 : vector<2x8x128xf32>
    %43 = vector.shape_cast %42 : vector<2x8x128xf32> to vector<16x128xf32>
    %44 = arith.addf %13, %43 : vector<16x128xf32>
    %45 = arith.truncf %44 : vector<16x128xf32> to vector<16x128xbf16>
    %c0_21 = arith.constant 0 : index
    %c0_22 = arith.constant 0 : index
    %46 = vector.load %arg6[%c0_21, %c0_22] : memref<256x128xbf16, #tpu.memory_space<vmem>>, vector<128x128xbf16>
    %cst_23 = arith.constant dense<0.000000e+00> : vector<16x128xf32>
    %47 = tpu.matmul %45, %46, %cst_23 {dimension_numbers = #tpu.dot_dimension_numbers<[1], [0], [0], [1], [0, 0, 1, 1], [], []>} : vector<16x128xbf16>, vector<128x128xbf16>, vector<16x128xf32> -> vector<16x128xf32>
    %c0_24 = arith.constant 0 : index
    %c0_25 = arith.constant 0 : index
    %48 = vector.load %arg9[%c0_24, %c0_25] : memref<2x128xf32, #tpu.memory_space<vmem>>, vector<1x128xf32>
    %49 = vector.broadcast %48 : vector<1x128xf32> to vector<16x128xf32>
    %50 = arith.addf %47, %49 : vector<16x128xf32>
    %cst_26 = arith.constant 0.000000e+00 : f32
    %51 = vector.broadcast %cst_26 : f32 to vector<16x128xf32>
    %52 = arith.maximumf %50, %51 : vector<16x128xf32>
    %53 = arith.truncf %52 : vector<16x128xf32> to vector<16x128xbf16>
    %c128 = arith.constant 128 : index
    %c0_27 = arith.constant 0 : index
    %54 = vector.load %arg6[%c128, %c0_27] : memref<256x128xbf16, #tpu.memory_space<vmem>>, vector<128x128xbf16>
    %cst_28 = arith.constant dense<0.000000e+00> : vector<16x128xf32>
    %55 = tpu.matmul %53, %54, %cst_28 {dimension_numbers = #tpu.dot_dimension_numbers<[1], [0], [0], [1], [0, 0, 1, 1], [], []>} : vector<16x128xbf16>, vector<128x128xbf16>, vector<16x128xf32> -> vector<16x128xf32>
    %c1 = arith.constant 1 : index
    %c0_29 = arith.constant 0 : index
    %56 = vector.load %arg9[%c1, %c0_29] : memref<2x128xf32, #tpu.memory_space<vmem>>, vector<1x128xf32>
    %57 = vector.broadcast %56 : vector<1x128xf32> to vector<16x128xf32>
    %58 = arith.addf %55, %57 : vector<16x128xf32>
    %c16 = arith.constant 16 : index
    %c0_30 = arith.constant 0 : index
    %59 = vector.load %arg12[%c16, %c0_30] : memref<32x128xf32, #tpu.memory_space<vmem>>, vector<8x128xf32>
    %c24 = arith.constant 24 : index
    %c0_31 = arith.constant 0 : index
    %60 = vector.load %arg12[%c24, %c0_31] : memref<32x128xf32, #tpu.memory_space<vmem>>, vector<8x128xf32>
    %61 = vector.shape_cast %58 : vector<16x128xf32> to vector<2x8x128xf32>
    %cst_32 = arith.constant dense<0.000000e+00> : vector<2x128xf32>
    %62 = vector.multi_reduction <add>, %61, %cst_32 [1] : vector<2x8x128xf32> to vector<2x128xf32>
    %63 = vector.shape_cast %62 : vector<2x128xf32> to vector<2x1x128xf32>
    %cst_33 = arith.constant dense<0.000000e+00> : vector<2x1xf32>
    %64 = vector.multi_reduction <add>, %63, %cst_33 [2] : vector<2x1x128xf32> to vector<2x1xf32>
    %65 = vector.shape_cast %64 : vector<2x1xf32> to vector<2x1x1xf32>
    %cst_34 = arith.constant 9.765625E-4 : f32
    %66 = vector.broadcast %cst_34 : f32 to vector<2x1x1xf32>
    %67 = arith.mulf %65, %66 : vector<2x1x1xf32>
    %68 = vector.broadcast %67 : vector<2x1x1xf32> to vector<2x8x128xf32>
    %69 = arith.subf %61, %68 : vector<2x8x128xf32>
    %70 = arith.mulf %69, %69 : vector<2x8x128xf32>
    %cst_35 = arith.constant dense<0.000000e+00> : vector<2x128xf32>
    %71 = vector.multi_reduction <add>, %70, %cst_35 [1] : vector<2x8x128xf32> to vector<2x128xf32>
    %72 = vector.shape_cast %71 : vector<2x128xf32> to vector<2x1x128xf32>
    %cst_36 = arith.constant dense<0.000000e+00> : vector<2x1xf32>
    %73 = vector.multi_reduction <add>, %72, %cst_36 [2] : vector<2x1x128xf32> to vector<2x1xf32>
    %74 = vector.shape_cast %73 : vector<2x1xf32> to vector<2x1x1xf32>
    %cst_37 = arith.constant 9.765625E-4 : f32
    %75 = vector.broadcast %cst_37 : f32 to vector<2x1x1xf32>
    %76 = arith.mulf %74, %75 : vector<2x1x1xf32>
    %cst_38 = arith.constant 9.99999974E-6 : f32
    %77 = vector.broadcast %cst_38 : f32 to vector<2x1x1xf32>
    %78 = arith.addf %76, %77 : vector<2x1x1xf32>
    %79 = math.rsqrt %78 : vector<2x1x1xf32>
    %80 = vector.shape_cast %59 : vector<8x128xf32> to vector<1x8x128xf32>
    %81 = vector.broadcast %79 : vector<2x1x1xf32> to vector<2x8x128xf32>
    %82 = vector.broadcast %80 : vector<1x8x128xf32> to vector<2x8x128xf32>
    %83 = arith.mulf %81, %82 : vector<2x8x128xf32>
    %84 = arith.mulf %69, %83 : vector<2x8x128xf32>
    %85 = vector.shape_cast %60 : vector<8x128xf32> to vector<1x8x128xf32>
    %86 = vector.broadcast %85 : vector<1x8x128xf32> to vector<2x8x128xf32>
    %87 = arith.addf %84, %86 : vector<2x8x128xf32>
    %88 = vector.shape_cast %87 : vector<2x8x128xf32> to vector<16x128xf32>
    %89 = arith.addf %44, %88 : vector<16x128xf32>
    %90 = arith.truncf %89 : vector<16x128xf32> to vector<16x128xbf16>
    %c0_39 = arith.constant 0 : index
    %c0_40 = arith.constant 0 : index
    %91 = vector.load %arg7[%c0_39, %c0_40] : memref<128x256xbf16, #tpu.memory_space<vmem>>, vector<128x256xbf16>
    %cst_41 = arith.constant dense<0.000000e+00> : vector<16x256xf32>
    %92 = tpu.matmul %90, %91, %cst_41 {dimension_numbers = #tpu.dot_dimension_numbers<[1], [0], [0], [1], [0, 0, 1, 1], [], []>} : vector<16x128xbf16>, vector<128x256xbf16>, vector<16x256xf32> -> vector<16x256xf32>
    %c0_42 = arith.constant 0 : index
    %c0_43 = arith.constant 0 : index
    %93 = vector.load %arg10[%c0_42, %c0_43] : memref<1x256xf32, #tpu.memory_space<vmem>>, vector<1x256xf32>
    %94 = vector.broadcast %93 : vector<1x256xf32> to vector<16x256xf32>
    %95 = arith.addf %92, %94 : vector<16x256xf32>
    %96 = vector.extract_strided_slice %95 {offsets = [0, 0], sizes = [16, 128], strides = [1, 1]} : vector<16x256xf32> to vector<16x128xf32>
    %cst_44 = arith.constant 0.000000e+00 : f32
    %97 = vector.broadcast %cst_44 : f32 to vector<16x128xf32>
    %98 = arith.maximumf %96, %97 : vector<16x128xf32>
    %99 = arith.truncf %98 : vector<16x128xf32> to vector<16x128xbf16>
    %100 = vector.extract_strided_slice %95 {offsets = [0, 128], sizes = [16, 128], strides = [1, 1]} : vector<16x256xf32> to vector<16x128xf32>
    %c0_45 = arith.constant 0 : index
    %c0_46 = arith.constant 0 : index
    %101 = vector.load %arg8[%c0_45, %c0_46] : memref<128x128xbf16, #tpu.memory_space<vmem>>, vector<128x128xbf16>
    %cst_47 = arith.constant dense<0.000000e+00> : vector<16x128xf32>
    %102 = tpu.matmul %99, %101, %cst_47 {dimension_numbers = #tpu.dot_dimension_numbers<[1], [0], [0], [1], [0, 0, 1, 1], [], []>} : vector<16x128xbf16>, vector<128x128xbf16>, vector<16x128xf32> -> vector<16x128xf32>
    %c0_48 = arith.constant 0 : index
    %c0_49 = arith.constant 0 : index
    %103 = vector.load %arg11[%c0_48, %c0_49] : memref<1x128xf32, #tpu.memory_space<vmem>>, vector<1x128xf32>
    %104 = vector.broadcast %103 : vector<1x128xf32> to vector<16x128xf32>
    %105 = arith.addf %102, %104 : vector<16x128xf32>
    %c0_50 = arith.constant 0 : index
    %c0_51 = arith.constant 0 : index
    %106 = vector.load %arg13[%c0_50, %c0_51] : memref<16x128xf32, #tpu.memory_space<vmem>>, vector<8x128xf32>
    %c8_52 = arith.constant 8 : index
    %c0_53 = arith.constant 0 : index
    %107 = vector.load %arg13[%c8_52, %c0_53] : memref<16x128xf32, #tpu.memory_space<vmem>>, vector<8x128xf32>
    %108 = vector.shape_cast %100 : vector<16x128xf32> to vector<2x8x128xf32>
    %cst_54 = arith.constant dense<0.000000e+00> : vector<2x128xf32>
    %109 = vector.multi_reduction <add>, %108, %cst_54 [1] : vector<2x8x128xf32> to vector<2x128xf32>
    %110 = vector.shape_cast %109 : vector<2x128xf32> to vector<2x1x128xf32>
    %cst_55 = arith.constant dense<0.000000e+00> : vector<2x1xf32>
    %111 = vector.multi_reduction <add>, %110, %cst_55 [2] : vector<2x1x128xf32> to vector<2x1xf32>
    %112 = vector.shape_cast %111 : vector<2x1xf32> to vector<2x1x1xf32>
    %cst_56 = arith.constant 9.765625E-4 : f32
    %113 = vector.broadcast %cst_56 : f32 to vector<2x1x1xf32>
    %114 = arith.mulf %112, %113 : vector<2x1x1xf32>
    %115 = vector.broadcast %114 : vector<2x1x1xf32> to vector<2x8x128xf32>
    %116 = arith.subf %108, %115 : vector<2x8x128xf32>
    %117 = arith.mulf %116, %116 : vector<2x8x128xf32>
    %cst_57 = arith.constant dense<0.000000e+00> : vector<2x128xf32>
    %118 = vector.multi_reduction <add>, %117, %cst_57 [1] : vector<2x8x128xf32> to vector<2x128xf32>
    %119 = vector.shape_cast %118 : vector<2x128xf32> to vector<2x1x128xf32>
    %cst_58 = arith.constant dense<0.000000e+00> : vector<2x1xf32>
    %120 = vector.multi_reduction <add>, %119, %cst_58 [2] : vector<2x1x128xf32> to vector<2x1xf32>
    %121 = vector.shape_cast %120 : vector<2x1xf32> to vector<2x1x1xf32>
    %cst_59 = arith.constant 9.765625E-4 : f32
    %122 = vector.broadcast %cst_59 : f32 to vector<2x1x1xf32>
    %123 = arith.mulf %121, %122 : vector<2x1x1xf32>
    %cst_60 = arith.constant 9.99999974E-6 : f32
    %124 = vector.broadcast %cst_60 : f32 to vector<2x1x1xf32>
    %125 = arith.addf %123, %124 : vector<2x1x1xf32>
    %126 = math.rsqrt %125 : vector<2x1x1xf32>
    %127 = vector.shape_cast %106 : vector<8x128xf32> to vector<1x8x128xf32>
    %128 = vector.broadcast %126 : vector<2x1x1xf32> to vector<2x8x128xf32>
    %129 = vector.broadcast %127 : vector<1x8x128xf32> to vector<2x8x128xf32>
    %130 = arith.mulf %128, %129 : vector<2x8x128xf32>
    %131 = arith.mulf %116, %130 : vector<2x8x128xf32>
    %132 = vector.shape_cast %107 : vector<8x128xf32> to vector<1x8x128xf32>
    %133 = vector.broadcast %132 : vector<1x8x128xf32> to vector<2x8x128xf32>
    %134 = arith.addf %131, %133 : vector<2x8x128xf32>
    %135 = vector.shape_cast %134 : vector<2x8x128xf32> to vector<16x128xf32>
    %136 = arith.addf %105, %135 : vector<16x128xf32>
    %c0_61 = arith.constant 0 : index
    %c0_62 = arith.constant 0 : index
    %137 = vector.load %arg14[%c0_61, %c0_62] : memref<16x128xf32, #tpu.memory_space<vmem>>, vector<16x128xf32>
    tpu.vector_store %arg14[%c0_61, %c0_62], %136 {strides = array<i32>} : memref<16x128xf32, #tpu.memory_space<vmem>>, vector<16x128xf32>,
    return
  }
  func.func @transform_0(%arg0: i32) -> (i32, i32) {
    %c0_i32 = arith.constant 0 : i32
    %c0_i32_0 = arith.constant 0 : i32
    return %arg0, %c0_i32 : i32, i32
  }
  func.func @transform_1(%arg0: i32) -> (i32, i32) {
    %c0_i32 = arith.constant 0 : i32
    %c0_i32_0 = arith.constant 0 : i32
    %c0_i32_1 = arith.constant 0 : i32
    return %c0_i32, %c0_i32_0 : i32, i32
  }
  func.func @transform_2(%arg0: i32) -> (i32, i32) {
    %c0_i32 = arith.constant 0 : i32
    %c0_i32_0 = arith.constant 0 : i32
    %c0_i32_1 = arith.constant 0 : i32
    return %c0_i32, %c0_i32_0 : i32, i32
  }
  func.func @transform_3(%arg0: i32) -> (i32, i32) {
    %c0_i32 = arith.constant 0 : i32
    %c0_i32_0 = arith.constant 0 : i32
    %c0_i32_1 = arith.constant 0 : i32
    return %c0_i32, %c0_i32_0 : i32, i32
  }
  func.func @transform_4(%arg0: i32) -> (i32, i32) {
    %c0_i32 = arith.constant 0 : i32
    %c0_i32_0 = arith.constant 0 : i32
    %c0_i32_1 = arith.constant 0 : i32
    return %c0_i32, %c0_i32_0 : i32, i32
  }
  func.func @transform_5(%arg0: i32) -> (i32, i32) {
    %c0_i32 = arith.constant 0 : i32
    %c0_i32_0 = arith.constant 0 : i32
    %c0_i32_1 = arith.constant 0 : i32
    return %c0_i32, %c0_i32_0 : i32, i32
  }
  func.func @transform_6(%arg0: i32) -> (i32, i32) {
    %c0_i32 = arith.constant 0 : i32
    %c0_i32_0 = arith.constant 0 : i32
    %c0_i32_1 = arith.constant 0 : i32
    return %c0_i32, %c0_i32_0 : i32, i32
  }
  func.func @transform_7(%arg0: i32) -> (i32, i32) {
    %c0_i32 = arith.constant 0 : i32
    %c0_i32_0 = arith.constant 0 : i32
    %c0_i32_1 = arith.constant 0 : i32
    return %c0_i32, %c0_i32_0 : i32, i32
  }
  func.func @transform_8(%arg0: i32) -> (i32, i32) {
    %c0_i32 = arith.constant 0 : i32
    %c0_i32_0 = arith.constant 0 : i32
    %c0_i32_1 = arith.constant 0 : i32
    return %c0_i32, %c0_i32_0 : i32, i32
  }
  func.func @transform_9(%arg0: i32) -> (i32, i32) {
    %c0_i32 = arith.constant 0 : i32
    %c0_i32_0 = arith.constant 0 : i32
    %c0_i32_1 = arith.constant 0 : i32
    return %c0_i32, %c0_i32_0 : i32, i32
  }
  func.func @transform_10(%arg0: i32) -> (i32, i32) {
    %c0_i32 = arith.constant 0 : i32
    %c0_i32_0 = arith.constant 0 : i32
    %c0_i32_1 = arith.constant 0 : i32
    return %c0_i32, %c0_i32_0 : i32, i32
  }
  func.func @transform_11(%arg0: i32) -> (i32, i32) {
    %c0_i32 = arith.constant 0 : i32
    %c0_i32_0 = arith.constant 0 : i32
    %c0_i32_1 = arith.constant 0 : i32
    return %c0_i32, %c0_i32_0 : i32, i32
  }
  func.func @transform_12(%arg0: i32) -> (i32, i32) {
    %c0_i32 = arith.constant 0 : i32
    %c0_i32_0 = arith.constant 0 : i32
    %c0_i32_1 = arith.constant 0 : i32
    return %c0_i32, %c0_i32_0 : i32, i32
  }
  func.func @transform_13(%arg0: i32) -> (i32, i32) {
    %c0_i32 = arith.constant 0 : i32
    %c0_i32_0 = arith.constant 0 : i32
    return %arg0, %c0_i32 : i32, i32
  }
}

</mosaic_0001>

<llo_original>
// kernel: forward.1
$region0: #{forward.1}
  #allocation0 [shape = 'u32[]', space=smem, size = 0x4, offset = 0x4, fixed_abs, tag = 'smem constant byte address 0x4 - core index']
  #allocation1 [shape = 'u32[144,128]{1,0:T(1,128)}', space=vmem, size = 0x12000, scoped, tag = 'internal scratch']
  %s0 = inlined_call_operand.vmem [shape: bf16[16,128], index: 0, kind: input, shape index: {}]
  %s1 = inlined_call_operand.vmem [shape: bf16[32,16], index: 1, kind: input, shape index: {}]
  %s2 = inlined_call_operand.hbm [shape: bf16[16,16], index: 2, kind: input, shape index: {}]
  %s3 = inlined_call_operand.vmem [shape: f32[32,128], index: 3, kind: input, shape index: {}]
  %s4 = inlined_call_operand.hbm [shape: f32[16,128], index: 4, kind: input, shape index: {}]
  %s5 = inlined_call_operand.vmem [shape: bf16[256,128], index: 5, kind: input, shape index: {}]
  %s6 = inlined_call_operand.hbm [shape: bf16[128,256], index: 6, kind: input, shape index: {}]
  %s7 = inlined_call_operand.hbm [shape: bf16[128,128], index: 7, kind: input, shape index: {}]
  %s8 = inlined_call_operand.vmem [shape: f32[2,128], index: 8, kind: input, shape index: {}]
  %s9 = inlined_call_operand.hbm [shape: f32[1,256], index: 9, kind: input, shape index: {}]
  %s10 = inlined_call_operand.vmem [shape: f32[1,128], index: 10, kind: input, shape index: {}]
  %s11 = inlined_call_operand.vmem [shape: f32[32,128], index: 11, kind: input, shape index: {}]
  %s12 = inlined_call_operand.hbm [shape: f32[16,128], index: 12, kind: input, shape index: {}]
  %s13 = inlined_call_operand.vmem [shape: f32[16,128], index: 13, kind: output, shape index: {}]
  %s14 = sld [smem:[#allocation0]]
  $region86: #{forward.1} parent=0
    _
  %s16 = ssub.s32 1, %s14
  %s17 = scalar_select 0, %s16, %s14
  $region1: #{forward.1} parent=0
    #allocation2 [shape = 'u8[4096]{0}', space=vmem, size = 0x1000, scoped, tag = 'input window, operand 2, single buffered']
    #allocation3 [shape = 's32[1]{0}', space=sflag, size = 0x4, scoped, tag = 'scoped memory for forward.1']
    #allocation4 [shape = 'u8[8192]{0}', space=vmem, size = 0x2000, scoped, tag = 'input window, operand 4, single buffered']
    #allocation5 [shape = 's32[1]{0}', space=sflag, size = 0x4, scoped, tag = 'scoped memory for forward.1']
    #allocation6 [shape = 'u8[65536]{0}', space=vmem, size = 0x10000, scoped, tag = 'input window, operand 6, single buffered']
    #allocation7 [shape = 'u8[32768]{0}', space=vmem, size = 0x8000, scoped, tag = 'input window, operand 7, single buffered']
    #allocation8 [shape = 's32[1]{0}', space=sflag, size = 0x4, scoped, tag = 'scoped memory for forward.1']
    #allocation9 [shape = 'u8[1024]{0}', space=vmem, size = 0x400, scoped, tag = 'input window, operand 9, single buffered']
    #allocation10 [shape = 'u8[8192]{0}', space=vmem, size = 0x2000, scoped, tag = 'input window, operand 12, single buffered']
    #allocation11 [shape = 's32[1]{0}', space=sflag, size = 0x4, scoped, tag = 'scoped memory for forward.1']
    %18 = vsyncpa [#allocation3], 0
    %19 = vsyncpa [#allocation5], 0
    %20 = vsyncpa [#allocation8], 0
    %21 = vsyncpa [#allocation11], 0
    // Predicated region
    $region2: #{forward.1} parent=1 // pred_check
      _
    $region3: #{forward.1} parent=1 // pred_check_branch
      %23 = sbr.rel (0) target = $region5
    $region4: #{forward.1} parent=1 // pred_region
      _
    $region5: #{forward.1} parent=1 // pred_fallthru
      _
    // Predicated region
    $region6: #{forward.1} parent=1 // pred_check
      _
    $region7: #{forward.1} parent=1 // pred_check_branch
      %25 = sbr.rel (0) target = $region9
    $region8: #{forward.1} parent=1 // pred_region
      _
    $region9: #{forward.1} parent=1 // pred_fallthru
      _
    // Predicated region
    $region10: #{forward.1} parent=1 // pred_check
      _
    $region11: #{forward.1} parent=1 // pred_check_branch
      %27 = sbr.rel (0) target = $region13
    $region12: #{forward.1} parent=1 // pred_region
      %s29 = ssub.s32 128, 128
      %30 = vsyncadd [#allocation3], %s29
      %s31 = sshll.u32 [#allocation2], 4
      %s32 = int_to_ptr.vmem [resolvable:$true] %s31
      %37 = dma.hbm_to_vmem [thread:$0]  %s2, 128, %s32, [#allocation3], 64, 64, 4
    $region13: #{forward.1} parent=1 // pred_fallthru
      _
    // Predicated region
    $region14: #{forward.1} parent=1 // pred_check
      _
    $region15: #{forward.1} parent=1 // pred_check_branch
      %39 = sbr.rel (0) target = $region17
    $region16: #{forward.1} parent=1 // pred_region
      _
    $region17: #{forward.1} parent=1 // pred_fallthru
      _
    // Predicated region
    $region18: #{forward.1} parent=1 // pred_check
      _
    $region19: #{forward.1} parent=1 // pred_check_branch
      %41 = sbr.rel (0) target = $region21
    $region20: #{forward.1} parent=1 // pred_region
      %s43 = ssub.s32 256, 256
      %44 = vsyncadd [#allocation5], %s43
      %s45 = sshll.u32 [#allocation4], 4
      %s46 = int_to_ptr.vmem [resolvable:$true] %s45
      %51 = dma.hbm_to_vmem [thread:$0]  %s4, 256, %s46, [#allocation5], 128, 128, 8
    $region21: #{forward.1} parent=1 // pred_fallthru
      _
    // Predicated region
    $region22: #{forward.1} parent=1 // pred_check
      _
    $region23: #{forward.1} parent=1 // pred_check_branch
      %53 = sbr.rel (0) target = $region25
    $region24: #{forward.1} parent=1 // pred_region
      _
    $region25: #{forward.1} parent=1 // pred_fallthru
      _
    // Predicated region
    $region26: #{forward.1} parent=1 // pred_check
      _
    $region27: #{forward.1} parent=1 // pred_check_branch
      %55 = sbr.rel (0) target = $region29
    $region28: #{forward.1} parent=1 // pred_region
      %s57 = ssub.s32 2048, 2048
      %58 = vsyncadd [#allocation5], %s57
      %s59 = sshll.u32 [#allocation6], 4
      %s60 = int_to_ptr.vmem [resolvable:$true] %s59
      %65 = dma.hbm_to_vmem [thread:$0]  %s6, 2048, %s60, [#allocation5], 128, 128, 8
    $region29: #{forward.1} parent=1 // pred_fallthru
      _
    // Predicated region
    $region30: #{forward.1} parent=1 // pred_check
      _
    $region31: #{forward.1} parent=1 // pred_check_branch
      %67 = sbr.rel (0) target = $region33
    $region32: #{forward.1} parent=1 // pred_region
      %s69 = ssub.s32 1024, 1024
      %70 = vsyncadd [#allocation8], %s69
      %s71 = sshll.u32 [#allocation7], 4
      %s72 = int_to_ptr.vmem [resolvable:$true] %s71
      %77 = dma.hbm_to_vmem [thread:$0]  %s7, 1024, %s72, [#allocation8], 64, 64, 4
    $region33: #{forward.1} parent=1 // pred_fallthru
      _
    // Predicated region
    $region34: #{forward.1} parent=1 // pred_check
      _
    $region35: #{forward.1} parent=1 // pred_check_branch
      %79 = sbr.rel (0) target = $region37
    $region36: #{forward.1} parent=1 // pred_region
      _
    $region37: #{forward.1} parent=1 // pred_fallthru
      _
    // Predicated region
    $region38: #{forward.1} parent=1 // pred_check
      _
    $region39: #{forward.1} parent=1 // pred_check_branch
      %81 = sbr.rel (0) target = $region41
    $region40: #{forward.1} parent=1 // pred_region
      %s83 = ssub.s32 32, 32
      %84 = vsyncadd [#allocation8], %s83
      %s86 = sshll.u32 [#allocation9], 4
      %s87 = int_to_ptr.vmem [resolvable:$true] %s86
      %89 = dma.hbm_to_vmem [thread:$0]  %s9, 32, %s87, [#allocation8]
    $region41: #{forward.1} parent=1 // pred_fallthru
      _
    // Predicated region
    $region42: #{forward.1} parent=1 // pred_check
      _
    $region43: #{forward.1} parent=1 // pred_check_branch
      %91 = sbr.rel (0) target = $region45
    $region44: #{forward.1} parent=1 // pred_region
      _
    $region45: #{forward.1} parent=1 // pred_fallthru
      _
    // Predicated region
    $region46: #{forward.1} parent=1 // pred_check
      _
    $region47: #{forward.1} parent=1 // pred_check_branch
      %93 = sbr.rel (0) target = $region49
    $region48: #{forward.1} parent=1 // pred_region
      _
    $region49: #{forward.1} parent=1 // pred_fallthru
      _
    // Predicated region
    $region50: #{forward.1} parent=1 // pred_check
      _
    $region51: #{forward.1} parent=1 // pred_check_branch
      %95 = sbr.rel (0) target = $region53
    $region52: #{forward.1} parent=1 // pred_region
      %s97 = ssub.s32 256, 256
      %98 = vsyncadd [#allocation11], %s97
      %s99 = sshll.u32 [#allocation10], 4
      %s100 = int_to_ptr.vmem [resolvable:$true] %s99
      %105 = dma.hbm_to_vmem [thread:$0]  %s12, 256, %s100, [#allocation11], 128, 128, 8
    $region53: #{forward.1} parent=1 // pred_fallthru
      _
    // Predicated region
    $region54: #{forward.1} parent=1 // pred_check
      _
    $region55: #{forward.1} parent=1 // pred_check_branch
      %107 = sbr.rel (0) target = $region57
    $region56: #{forward.1} parent=1 // pred_region
      %108 = dma.done [#allocation3], 128
    $region57: #{forward.1} parent=1 // pred_fallthru
      _
    // Predicated region
    $region58: #{forward.1} parent=1 // pred_check
      _
    $region59: #{forward.1} parent=1 // pred_check_branch
      %110 = sbr.rel (0) target = $region61
    $region60: #{forward.1} parent=1 // pred_region
      %111 = dma.done [#allocation5], 256
    $region61: #{forward.1} parent=1 // pred_fallthru
      _
    // Predicated region
    $region62: #{forward.1} parent=1 // pred_check
      _
    $region63: #{forward.1} parent=1 // pred_check_branch
      %113 = sbr.rel (0) target = $region65
    $region64: #{forward.1} parent=1 // pred_region
      %114 = dma.done [#allocation5], 2048
    $region65: #{forward.1} parent=1 // pred_fallthru
      _
    // Predicated region
    $region66: #{forward.1} parent=1 // pred_check
      _
    $region67: #{forward.1} parent=1 // pred_check_branch
      %116 = sbr.rel (0) target = $region69
    $region68: #{forward.1} parent=1 // pred_region
      %117 = dma.done [#allocation8], 1024
    $region69: #{forward.1} parent=1 // pred_fallthru
      _
    // Predicated region
    $region70: #{forward.1} parent=1 // pred_check
      _
    $region71: #{forward.1} parent=1 // pred_check_branch
      %119 = sbr.rel (0) target = $region73
    $region72: #{forward.1} parent=1 // pred_region
      %120 = dma.done [#allocation8], 32
    $region73: #{forward.1} parent=1 // pred_fallthru
      _
    // Predicated region
    $region74: #{forward.1} parent=1 // pred_check
      _
    $region75: #{forward.1} parent=1 // pred_check_branch
      %122 = sbr.rel (0) target = $region77
    $region76: #{forward.1} parent=1 // pred_region
      %123 = dma.done [#allocation11], 256
    $region77: #{forward.1} parent=1 // pred_fallthru
      _
    %v125 = vld [vmem:[%s0] sm:$0xf]
    %v126 = vld [vmem:[%s0 + $0x4] sm:$0xf]
    %v127 = vld [vmem:[%s1] sm:$0xf]
    %v128 = vld [vmem:[%s1 + $0x4] sm:$0xf]
    %v129 = vld [vmem:[%s1 + $0x8] sm:$0xf]
    %v130 = vld [vmem:[%s1 + $0xc] sm:$0xf]
    %v131 = vld [vmem:[%s3] sm:$0xff]
    %v132 = vld [vmem:[%s3 + $0x8] sm:$0xff]
    %v133 = vld [vmem:[%s3 + $0x10] sm:$0xff]
    %v134 = vld [vmem:[%s3 + $0x18] sm:$0xff]
    %v139 = vunpack.c.l.b16 %v127
    %v140 = vunpack.c.l.b16 %v128
    %v141 = vunpack.c.l.b16 %v129
    %v142 = vunpack.c.l.b16 %v130
    %v143 = vpack.c.b16 %v140, %v139
    %v144 = vpack.c.b16 %v142, %v141
    %v147 = vunpack.c.l.b16 %v125
    %v148 = vunpack.c.l.b16 %v126
    %v149 = vpack.c.b16 %v148, %v147
    %vm151 = vcmask 130048
    %v153 = vsel %vm151, %v143, 0
    %v156 = vsel %vm151, %v144, 0
    %158 = vmatprep.subr.bf16.mxu0 0
    %159 = vmatpush1.bf16.msra.mxu0 %v149
    %160 = vmatprep.subr.bf16.mxu0 0
    %161 = vmatpush1.bf16.msra.mxu0 0
    %162 = vmatprep.subr.bf16.mxu0 0
    %163 = vmatpush1.bf16.msra.mxu0 0
    %164 = vmatprep.subr.bf16.mxu0 0
    %165 = vmatpush1.bf16.msra.mxu0 0
    %166 = vmatprep.subr.bf16.mxu0 0
    %167 = vmatpush1.bf16.msra.mxu0 0
    %168 = vmatprep.subr.bf16.mxu0 0
    %169 = vmatpush1.bf16.msra.mxu0 0
    %170 = vmatprep.subr.bf16.mxu0 0
    %171 = vmatpush1.bf16.msra.mxu0 0
    %172 = vmatprep.subr.bf16.mxu0 0
    %173 = vmatpush1.bf16.msra.mxu0 0
    %174 = vmatprep.subr.bf16.mxu0 0
    %175 = vmatpush1.bf16.msra.mxu0 0
    %176 = vmatprep.subr.bf16.mxu0 0
    %177 = vmatpush1.bf16.msra.mxu0 0
    %178 = vmatprep.subr.bf16.mxu0 0
    %179 = vmatpush1.bf16.msra.mxu0 0
    %180 = vmatprep.subr.bf16.mxu0 0
    %181 = vmatpush1.bf16.msra.mxu0 0
    %182 = vmatprep.subr.bf16.mxu0 0
    %183 = vmatpush1.bf16.msra.mxu0 0
    %184 = vmatprep.subr.bf16.mxu0 0
    %185 = vmatpush1.bf16.msra.mxu0 0
    %186 = vmatprep.subr.bf16.mxu0 0
    %187 = vmatpush1.bf16.msra.mxu0 0
    %188 = vmatprep.subr.bf16.mxu0 0
    %189 = vmatpush1.bf16.msra.mxu0 0
    %190 = vmatprep.mubr.bf16.mxu0 0
    %191 = vmatmul.mubr.bf16.gmra.mrb[0].mxu0 %v153
    %v192 = vpop.f32.mrb[0].mxu0
    %v193 = vadd.f32 %v131, %v192
    %v194 = vpop.f32.mrb[0].mxu0
    %v195 = vpop.f32.mrb[0].mxu0
    %v196 = vadd.f32 %v132, %v195
    %v197 = vpop.f32.mrb[0].mxu0
    %198 = vmatprep.mubr.bf16.mxu0 0
    %199 = vmatmul.mubr.bf16.gmra.mrb[0].mxu0 %v156
    %v200 = vpop.f32.mrb[0].mxu0
    %v201 = vadd.f32 %v133, %v200
    %v202 = vpop.f32.mrb[0].mxu0
    %v203 = vpop.f32.mrb[0].mxu0
    %v204 = vadd.f32 %v134, %v203
    %v205 = vpop.f32.mrb[0].mxu0
    %206 = vdwg.mxu0
    %v207 = vmax.f32 %v193, 0.0
    %v208 = vmax.f32 %v196, 0.0
    %v209 = vpack.c.bf16 %v208, %v207
    %v210 = vld [vmem:[#allocation2] sm:$0xf]
    %v211 = vld [vmem:[#allocation2 + $0x4] sm:$0xf]
    %v212 = vld [vmem:[#allocation4] sm:$0xff]
    %v213 = vld [vmem:[#allocation4 + $0x8] sm:$0xff]
    %v216 = vunpack.c.l.b16 %v210
    %v217 = vunpack.c.l.b16 %v211
    %v218 = vpack.c.b16 %v217, %v216
    %v220 = vsel %vm151, %v218, 0
    %222 = vmatprep.subr.bf16.mxu0 0
    %223 = vmatpush1.bf16.msra.mxu0 %v209
    %224 = vmatprep.subr.bf16.mxu0 0
    %225 = vmatpush1.bf16.msra.mxu0 0
    %226 = vmatprep.subr.bf16.mxu0 0
    %227 = vmatpush1.bf16.msra.mxu0 0
    %228 = vmatprep.subr.bf16.mxu0 0
    %229 = vmatpush1.bf16.msra.mxu0 0
    %230 = vmatprep.subr.bf16.mxu0 0
    %231 = vmatpush1.bf16.msra.mxu0 0
    %232 = vmatprep.subr.bf16.mxu0 0
    %233 = vmatpush1.bf16.msra.mxu0 0
    %234 = vmatprep.subr.bf16.mxu0 0
    %235 = vmatpush1.bf16.msra.mxu0 0
    %236 = vmatprep.subr.bf16.mxu0 0
    %237 = vmatpush1.bf16.msra.mxu0 0
    %238 = vmatprep.subr.bf16.mxu0 0
    %239 = vmatpush1.bf16.msra.mxu0 0
    %240 = vmatprep.subr.bf16.mxu0 0
    %241 = vmatpush1.bf16.msra.mxu0 0
    %242 = vmatprep.subr.bf16.mxu0 0
    %243 = vmatpush1.bf16.msra.mxu0 0
    %244 = vmatprep.subr.bf16.mxu0 0
    %245 = vmatpush1.bf16.msra.mxu0 0
    %246 = vmatprep.subr.bf16.mxu0 0
    %247 = vmatpush1.bf16.msra.mxu0 0
    %248 = vmatprep.subr.bf16.mxu0 0
    %249 = vmatpush1.bf16.msra.mxu0 0
    %250 = vmatprep.subr.bf16.mxu0 0
    %251 = vmatpush1.bf16.msra.mxu0 0
    %252 = vmatprep.subr.bf16.mxu0 0
    %253 = vmatpush1.bf16.msra.mxu0 0
    %254 = vmatprep.mubr.bf16.mxu0 0
    %255 = vmatmul.mubr.bf16.gmra.mrb[0].mxu0 %v220
    %v256 = vpop.f32.mrb[0].mxu0
    %v257 = vadd.f32 %v212, %v256
    %v258 = vpop.f32.mrb[0].mxu0
    %v259 = vpop.f32.mrb[0].mxu0
    %v260 = vadd.f32 %v213, %v259
    %v261 = vpop.f32.mrb[0].mxu0
    %262 = vdwg.mxu0
    %v263 = vld [vmem:[%s11] sm:$0xff]
    %v264 = vld [vmem:[%s11 + $0x8] sm:$0xff]
    %v265 = vrot.slane %v201, 4
    %v266 = vadd.f32 %v201, %v265
    %v267 = vrot.slane %v266, 2
    %v268 = vadd.f32 %v266, %v267
    %v269 = vrot.slane %v268, 1
    %v270 = vadd.f32 %v268, %v269
    %v271 = vrot.slane %v204, 4
    %v272 = vadd.f32 %v204, %v271
    %v273 = vrot.slane %v272, 2
    %v274 = vadd.f32 %v272, %v273
    %v275 = vrot.slane %v274, 1
    %v276 = vadd.f32 %v274, %v275
    %277 = vadd.xlane.f32.xlu0 %v270
    %v278 = vpop.xlane.xlu0 %277
    %279 = vadd.xlane.f32.xlu0 %v276
    %v280 = vpop.xlane.xlu0 %279
    %v281 = vmul.f32 %v278, 0.0009765625
    %v282 = vmul.f32 %v280, 0.0009765625
    %v283 = vsub.f32 %v201, %v281
    %v284 = vsub.f32 %v204, %v282
    %v285 = vmul.f32 %v283, %v283
    %v286 = vmul.f32 %v284, %v284
    %v287 = vrot.slane %v285, 4
    %v288 = vadd.f32 %v285, %v287
    %v289 = vrot.slane %v288, 2
    %v290 = vadd.f32 %v288, %v289
    %v291 = vrot.slane %v290, 1
    %v292 = vadd.f32 %v290, %v291
    %v293 = vrot.slane %v286, 4
    %v294 = vadd.f32 %v286, %v293
    %v295 = vrot.slane %v294, 2
    %v296 = vadd.f32 %v294, %v295
    %v297 = vrot.slane %v296, 1
    %v298 = vadd.f32 %v296, %v297
    %299 = vadd.xlane.f32.xlu0 %v292
    %v300 = vpop.xlane.xlu0 %299
    %301 = vadd.xlane.f32.xlu0 %v298
    %v302 = vpop.xlane.xlu0 %301
    %v303 = vmul.f32 %v300, 0.0009765625
    %v304 = vmul.f32 %v302, 0.0009765625
    %v305 = vadd.f32 %v303, 1e-05
    %v306 = vadd.f32 %v304, 1e-05
    %v307 = vrsqrt.pop %v305
    %v308 = vrsqrt.pop %v306
    %v309 = vmul.f32 %v307, %v263
    %v310 = vmul.f32 %v308, %v263
    %v311 = vmul.f32 %v283, %v309
    %v312 = vmul.f32 %v284, %v310
    %v313 = vadd.f32 %v311, %v264
    %v314 = vadd.f32 %v312, %v264
    %v315 = vadd.f32 %v257, %v313
    %v316 = vadd.f32 %v260, %v314
    %v317 = vpack.c.bf16 %v316, %v315
    %v318 = vld [vmem:[%s5] sm:$0xf]
    %v319 = vld [vmem:[%s5 + $0x4] sm:$0xf]
    %v320 = vld [vmem:[%s5 + $0x8] sm:$0xf]
    %v321 = vld [vmem:[%s5 + $0xc] sm:$0xf]
    %v322 = vld [vmem:[%s5 + $0x10] sm:$0xf]
    %v323 = vld [vmem:[%s5 + $0x14] sm:$0xf]
    %v324 = vld [vmem:[%s5 + $0x18] sm:$0xf]
    %v325 = vld [vmem:[%s5 + $0x1c] sm:$0xf]
    %v326 = vld [vmem:[%s5 + $0x20] sm:$0xf]
    %v327 = vld [vmem:[%s5 + $0x24] sm:$0xf]
    %v328 = vld [vmem:[%s5 + $0x28] sm:$0xf]
    %v329 = vld [vmem:[%s5 + $0x2c] sm:$0xf]
    %v330 = vld [vmem:[%s5 + $0x30] sm:$0xf]
    %v331 = vld [vmem:[%s5 + $0x34] sm:$0xf]
    %v332 = vld [vmem:[%s5 + $0x38] sm:$0xf]
    %v333 = vld [vmem:[%s5 + $0x3c] sm:$0xf]
    %v334 = vld [vmem:[%s8] sm:$0x1]
    %v335 = vlaneseq
    %v336 = vshrl.u32 %v335, 7
    %v337 = vsub.s32 0, %v336
    %v338 = vrot.slane %v334, %v337
    %v355 = vunpack.c.l.b16 %v318
    %v356 = vunpack.c.l.b16 %v319
    %v357 = vunpack.c.l.b16 %v320
    %v358 = vunpack.c.l.b16 %v321
    %v359 = vunpack.c.l.b16 %v322
    %v360 = vunpack.c.l.b16 %v323
    %v361 = vunpack.c.l.b16 %v324
    %v362 = vunpack.c.l.b16 %v325
    %v363 = vunpack.c.l.b16 %v326
    %v364 = vunpack.c.l.b16 %v327
    %v365 = vunpack.c.l.b16 %v328
    %v366 = vunpack.c.l.b16 %v329
    %v367 = vunpack.c.l.b16 %v330
    %v368 = vunpack.c.l.b16 %v331
    %v369 = vunpack.c.l.b16 %v332
    %v370 = vunpack.c.l.b16 %v333
    %v371 = vpack.c.b16 %v356, %v355
    %v372 = vpack.c.b16 %v358, %v357
    %v373 = vpack.c.b16 %v360, %v359
    %v374 = vpack.c.b16 %v362, %v361
    %v375 = vpack.c.b16 %v364, %v363
    %v376 = vpack.c.b16 %v366, %v365
    %v377 = vpack.c.b16 %v368, %v367
    %v378 = vpack.c.b16 %v370, %v369
    %387 = vmatprep.subr.bf16.mxu0 0
    %388 = vmatpush1.bf16.msra.mxu0 %v371
    %389 = vmatprep.subr.bf16.mxu0 0
    %390 = vmatpush1.bf16.msra.mxu0 %v372
    %391 = vmatprep.subr.bf16.mxu0 0
    %392 = vmatpush1.bf16.msra.mxu0 %v373
    %393 = vmatprep.subr.bf16.mxu0 0
    %394 = vmatpush1.bf16.msra.mxu0 %v374
    %395 = vmatprep.subr.bf16.mxu0 0
    %396 = vmatpush1.bf16.msra.mxu0 %v375
    %397 = vmatprep.subr.bf16.mxu0 0
    %398 = vmatpush1.bf16.msra.mxu0 %v376
    %399 = vmatprep.subr.bf16.mxu0 0
    %400 = vmatpush1.bf16.msra.mxu0 %v377
    %401 = vmatprep.subr.bf16.mxu0 0
    %402 = vmatpush1.bf16.msra.mxu0 %v378
    %403 = vmatprep.subr.bf16.mxu0 0
    %404 = vmatpush1.bf16.msra.mxu0 0
    %405 = vmatprep.subr.bf16.mxu0 0
    %406 = vmatpush1.bf16.msra.mxu0 0
    %407 = vmatprep.subr.bf16.mxu0 0
    %408 = vmatpush1.bf16.msra.mxu0 0
    %409 = vmatprep.subr.bf16.mxu0 0
    %410 = vmatpush1.bf16.msra.mxu0 0
    %411 = vmatprep.subr.bf16.mxu0 0
    %412 = vmatpush1.bf16.msra.mxu0 0
    %413 = vmatprep.subr.bf16.mxu0 0
    %414 = vmatpush1.bf16.msra.mxu0 0
    %415 = vmatprep.subr.bf16.mxu0 0
    %416 = vmatpush1.bf16.msra.mxu0 0
    %417 = vmatprep.subr.bf16.mxu0 0
    %418 = vmatpush1.bf16.msra.mxu0 0
    %419 = vmatprep.mubr.bf16.mxu0 0
    %420 = vmatmul.mubr.bf16.gmra.mrb[0].mxu0 %v317
    %v421 = vpop.f32.mrb[0].mxu0
    %v422 = vadd.f32 %v338, %v421
    %v423 = vpop.f32.mrb[0].mxu0
    %v424 = vpop.f32.mrb[0].mxu0
    %v425 = vadd.f32 %v338, %v424
    %v426 = vpop.f32.mrb[0].mxu0
    %427 = vdwg.mxu0
    %v428 = vmax.f32 %v422, 0.0
    %v429 = vmax.f32 %v425, 0.0
    %v430 = vpack.c.bf16 %v429, %v428
    %v431 = vld [vmem:[%s5 + $0x40] sm:$0xf]
    %v432 = vld [vmem:[%s5 + $0x44] sm:$0xf]
    %v433 = vld [vmem:[%s5 + $0x48] sm:$0xf]
    %v434 = vld [vmem:[%s5 + $0x4c] sm:$0xf]
    %v435 = vld [vmem:[%s5 + $0x50] sm:$0xf]
    %v436 = vld [vmem:[%s5 + $0x54] sm:$0xf]
    %v437 = vld [vmem:[%s5 + $0x58] sm:$0xf]
    %v438 = vld [vmem:[%s5 + $0x5c] sm:$0xf]
    %v439 = vld [vmem:[%s5 + $0x60] sm:$0xf]
    %v440 = vld [vmem:[%s5 + $0x64] sm:$0xf]
    %v441 = vld [vmem:[%s5 + $0x68] sm:$0xf]
    %v442 = vld [vmem:[%s5 + $0x6c] sm:$0xf]
    %v443 = vld [vmem:[%s5 + $0x70] sm:$0xf]
    %v444 = vld [vmem:[%s5 + $0x74] sm:$0xf]
    %v445 = vld [vmem:[%s5 + $0x78] sm:$0xf]
    %v446 = vld [vmem:[%s5 + $0x7c] sm:$0xf]
    %v447 = vld [vmem:[%s8 + $0x1] sm:$0x1]
    %v448 = vlaneseq
    %v449 = vshrl.u32 %v448, 7
    %v450 = vsub.s32 0, %v449
    %v451 = vrot.slane %v447, %v450
    %v468 = vunpack.c.l.b16 %v431
    %v469 = vunpack.c.l.b16 %v432
    %v470 = vunpack.c.l.b16 %v433
    %v471 = vunpack.c.l.b16 %v434
    %v472 = vunpack.c.l.b16 %v435
    %v473 = vunpack.c.l.b16 %v436
    %v474 = vunpack.c.l.b16 %v437
    %v475 = vunpack.c.l.b16 %v438
    %v476 = vunpack.c.l.b16 %v439
    %v477 = vunpack.c.l.b16 %v440
    %v478 = vunpack.c.l.b16 %v441
    %v479 = vunpack.c.l.b16 %v442
    %v480 = vunpack.c.l.b16 %v443
    %v481 = vunpack.c.l.b16 %v444
    %v482 = vunpack.c.l.b16 %v445
    %v483 = vunpack.c.l.b16 %v446
    %v484 = vpack.c.b16 %v469, %v468
    %v485 = vpack.c.b16 %v471, %v470
    %v486 = vpack.c.b16 %v473, %v472
    %v487 = vpack.c.b16 %v475, %v474
    %v488 = vpack.c.b16 %v477, %v476
    %v489 = vpack.c.b16 %v479, %v478
    %v490 = vpack.c.b16 %v481, %v480
    %v491 = vpack.c.b16 %v483, %v482
    %500 = vmatprep.subr.bf16.mxu0 0
    %501 = vmatpush1.bf16.msra.mxu0 %v484
    %502 = vmatprep.subr.bf16.mxu0 0
    %503 = vmatpush1.bf16.msra.mxu0 %v485
    %504 = vmatprep.subr.bf16.mxu0 0
    %505 = vmatpush1.bf16.msra.mxu0 %v486
    %506 = vmatprep.subr.bf16.mxu0 0
    %507 = vmatpush1.bf16.msra.mxu0 %v487
    %508 = vmatprep.subr.bf16.mxu0 0
    %509 = vmatpush1.bf16.msra.mxu0 %v488
    %510 = vmatprep.subr.bf16.mxu0 0
    %511 = vmatpush1.bf16.msra.mxu0 %v489
    %512 = vmatprep.subr.bf16.mxu0 0
    %513 = vmatpush1.bf16.msra.mxu0 %v490
    %514 = vmatprep.subr.bf16.mxu0 0
    %515 = vmatpush1.bf16.msra.mxu0 %v491
    %516 = vmatprep.subr.bf16.mxu0 0
    %517 = vmatpush1.bf16.msra.mxu0 0
    %518 = vmatprep.subr.bf16.mxu0 0
    %519 = vmatpush1.bf16.msra.mxu0 0
    %520 = vmatprep.subr.bf16.mxu0 0
    %521 = vmatpush1.bf16.msra.mxu0 0
    %522 = vmatprep.subr.bf16.mxu0 0
    %523 = vmatpush1.bf16.msra.mxu0 0
    %524 = vmatprep.subr.bf16.mxu0 0
    %525 = vmatpush1.bf16.msra.mxu0 0
    %526 = vmatprep.subr.bf16.mxu0 0
    %527 = vmatpush1.bf16.msra.mxu0 0
    %528 = vmatprep.subr.bf16.mxu0 0
    %529 = vmatpush1.bf16.msra.mxu0 0
    %530 = vmatprep.subr.bf16.mxu0 0
    %531 = vmatpush1.bf16.msra.mxu0 0
    %532 = vmatprep.mubr.bf16.mxu0 0
    %533 = vmatmul.mubr.bf16.gmra.mrb[0].mxu0 %v430
    %v534 = vpop.f32.mrb[0].mxu0
    %v535 = vadd.f32 %v451, %v534
    %v536 = vpop.f32.mrb[0].mxu0
    %v537 = vpop.f32.mrb[0].mxu0
    %v538 = vadd.f32 %v451, %v537
    %v539 = vpop.f32.mrb[0].mxu0
    %540 = vdwg.mxu0
    %v541 = vld [vmem:[%s11 + $0x10] sm:$0xff]
    %v542 = vld [vmem:[%s11 + $0x18] sm:$0xff]
    %v543 = vrot.slane %v535, 4
    %v544 = vadd.f32 %v535, %v543
    %v545 = vrot.slane %v544, 2
    %v546 = vadd.f32 %v544, %v545
    %v547 = vrot.slane %v546, 1
    %v548 = vadd.f32 %v546, %v547
    %v549 = vrot.slane %v538, 4
    %v550 = vadd.f32 %v538, %v549
    %v551 = vrot.slane %v550, 2
    %v552 = vadd.f32 %v550, %v551
    %v553 = vrot.slane %v552, 1
    %v554 = vadd.f32 %v552, %v553
    %555 = vadd.xlane.f32.xlu0 %v548
    %v556 = vpop.xlane.xlu0 %555
    %557 = vadd.xlane.f32.xlu0 %v554
    %v558 = vpop.xlane.xlu0 %557
    %v559 = vmul.f32 %v556, 0.0009765625
    %v560 = vmul.f32 %v558, 0.0009765625
    %v561 = vsub.f32 %v535, %v559
    %v562 = vsub.f32 %v538, %v560
    %v563 = vmul.f32 %v561, %v561
    %v564 = vmul.f32 %v562, %v562
    %v565 = vrot.slane %v563, 4
    %v566 = vadd.f32 %v563, %v565
    %v567 = vrot.slane %v566, 2
    %v568 = vadd.f32 %v566, %v567
    %v569 = vrot.slane %v568, 1
    %v570 = vadd.f32 %v568, %v569
    %v571 = vrot.slane %v564, 4
    %v572 = vadd.f32 %v564, %v571
    %v573 = vrot.slane %v572, 2
    %v574 = vadd.f32 %v572, %v573
    %v575 = vrot.slane %v574, 1
    %v576 = vadd.f32 %v574, %v575
    %577 = vadd.xlane.f32.xlu0 %v570
    %v578 = vpop.xlane.xlu0 %577
    %579 = vadd.xlane.f32.xlu0 %v576
    %v580 = vpop.xlane.xlu0 %579
    %v581 = vmul.f32 %v578, 0.0009765625
    %v582 = vmul.f32 %v580, 0.0009765625
    %v583 = vadd.f32 %v581, 1e-05
    %v584 = vadd.f32 %v582, 1e-05
    %v585 = vrsqrt.pop %v583
    %v586 = vrsqrt.pop %v584
    %v587 = vmul.f32 %v585, %v541
    %v588 = vmul.f32 %v586, %v541
    %v589 = vmul.f32 %v561, %v587
    %v590 = vmul.f32 %v562, %v588
    %v591 = vadd.f32 %v589, %v542
    %v592 = vadd.f32 %v590, %v542
    %v593 = vadd.f32 %v315, %v591
    %v594 = vadd.f32 %v316, %v592
    %v595 = vpack.c.bf16 %v594, %v593
    %v596 = vld [vmem:[#allocation6] sm:$0xff]
    %v597 = vld [vmem:[#allocation6 + $0x8] sm:$0xff]
    %v598 = vld [vmem:[#allocation6 + $0x10] sm:$0xff]
    %v599 = vld [vmem:[#allocation6 + $0x18] sm:$0xff]
    %v600 = vld [vmem:[#allocation6 + $0x20] sm:$0xff]
    %v601 = vld [vmem:[#allocation6 + $0x28] sm:$0xff]
    %v602 = vld [vmem:[#allocation6 + $0x30] sm:$0xff]
    %v603 = vld [vmem:[#allocation6 + $0x38] sm:$0xff]
    %v604 = vld [vmem:[#allocation6 + $0x40] sm:$0xff]
    %v605 = vld [vmem:[#allocation6 + $0x48] sm:$0xff]
    %v606 = vld [vmem:[#allocation6 + $0x50] sm:$0xff]
    %v607 = vld [vmem:[#allocation6 + $0x58] sm:$0xff]
    %v608 = vld [vmem:[#allocation6 + $0x60] sm:$0xff]
    %v609 = vld [vmem:[#allocation6 + $0x68] sm:$0xff]
    %v610 = vld [vmem:[#allocation6 + $0x70] sm:$0xff]
    %v611 = vld [vmem:[#allocation6 + $0x78] sm:$0xff]
    %v612 = vld [vmem:[#allocation9] sm:$0x3]
    %v614 = vlaneseq
    %v615 = vshrl.u32 %v614, 7
    %v616 = vsub.s32 0, %v615
    %v617 = vrot.slane %v612, %v616
    %v618 = vlaneseq
    %v619 = vshrl.u32 %v618, 7
    %v620 = vsub.s32 1, %v619
    %v621 = vrot.slane %v612, %v620
    %v640 = vunpack.c.l.b16 %v596
    %v641 = vunpack.c.h.b16 %v596
    %v642 = vunpack.c.l.b16 %v597
    %v643 = vunpack.c.h.b16 %v597
    %v644 = vunpack.c.l.b16 %v598
    %v645 = vunpack.c.h.b16 %v598
    %v646 = vunpack.c.l.b16 %v599
    %v647 = vunpack.c.h.b16 %v599
    %v648 = vunpack.c.l.b16 %v600
    %v649 = vunpack.c.h.b16 %v600
    %v650 = vunpack.c.l.b16 %v601
    %v651 = vunpack.c.h.b16 %v601
    %v652 = vunpack.c.l.b16 %v602
    %v653 = vunpack.c.h.b16 %v602
    %v654 = vunpack.c.l.b16 %v603
    %v655 = vunpack.c.h.b16 %v603
    %v656 = vunpack.c.l.b16 %v604
    %v657 = vunpack.c.h.b16 %v604
    %v658 = vunpack.c.l.b16 %v605
    %v659 = vunpack.c.h.b16 %v605
    %v660 = vunpack.c.l.b16 %v606
    %v661 = vunpack.c.h.b16 %v606
    %v662 = vunpack.c.l.b16 %v607
    %v663 = vunpack.c.h.b16 %v607
    %v664 = vunpack.c.l.b16 %v608
    %v665 = vunpack.c.h.b16 %v608
    %v666 = vunpack.c.l.b16 %v609
    %v667 = vunpack.c.h.b16 %v609
    %v668 = vunpack.c.l.b16 %v610
    %v669 = vunpack.c.h.b16 %v610
    %v670 = vunpack.c.l.b16 %v611
    %v671 = vunpack.c.h.b16 %v611
    %v672 = vpack.c.b16 %v642, %v640
    %v673 = vpack.c.b16 %v643, %v641
    %v674 = vpack.c.b16 %v646, %v644
    %v675 = vpack.c.b16 %v647, %v645
    %v676 = vpack.c.b16 %v650, %v648
    %v677 = vpack.c.b16 %v651, %v649
    %v678 = vpack.c.b16 %v654, %v652
    %v679 = vpack.c.b16 %v655, %v653
    %v680 = vpack.c.b16 %v658, %v656
    %v681 = vpack.c.b16 %v659, %v657
    %v682 = vpack.c.b16 %v662, %v660
    %v683 = vpack.c.b16 %v663, %v661
    %v684 = vpack.c.b16 %v666, %v664
    %v685 = vpack.c.b16 %v667, %v665
    %v686 = vpack.c.b16 %v670, %v668
    %v687 = vpack.c.b16 %v671, %v669
    %704 = vmatprep.subr.bf16.mxu0 %v673
    %705 = vmatpush1.bf16.msra.mxu0 %v672
    %706 = vmatprep.subr.bf16.mxu0 %v675
    %707 = vmatpush1.bf16.msra.mxu0 %v674
    %708 = vmatprep.subr.bf16.mxu0 %v677
    %709 = vmatpush1.bf16.msra.mxu0 %v676
    %710 = vmatprep.subr.bf16.mxu0 %v679
    %711 = vmatpush1.bf16.msra.mxu0 %v678
    %712 = vmatprep.subr.bf16.mxu0 %v681
    %713 = vmatpush1.bf16.msra.mxu0 %v680
    %714 = vmatprep.subr.bf16.mxu0 %v683
    %715 = vmatpush1.bf16.msra.mxu0 %v682
    %716 = vmatprep.subr.bf16.mxu0 %v685
    %717 = vmatpush1.bf16.msra.mxu0 %v684
    %718 = vmatprep.subr.bf16.mxu0 %v687
    %719 = vmatpush1.bf16.msra.mxu0 %v686
    %720 = vmatprep.subr.bf16.mxu0 0
    %721 = vmatpush1.bf16.msra.mxu0 0
    %722 = vmatprep.subr.bf16.mxu0 0
    %723 = vmatpush1.bf16.msra.mxu0 0
    %724 = vmatprep.subr.bf16.mxu0 0
    %725 = vmatpush1.bf16.msra.mxu0 0
    %726 = vmatprep.subr.bf16.mxu0 0
    %727 = vmatpush1.bf16.msra.mxu0 0
    %728 = vmatprep.subr.bf16.mxu0 0
    %729 = vmatpush1.bf16.msra.mxu0 0
    %730 = vmatprep.subr.bf16.mxu0 0
    %731 = vmatpush1.bf16.msra.mxu0 0
    %732 = vmatprep.subr.bf16.mxu0 0
    %733 = vmatpush1.bf16.msra.mxu0 0
    %734 = vmatprep.subr.bf16.mxu0 0
    %735 = vmatpush1.bf16.msra.mxu0 0
    %736 = vmatprep.mubr.bf16.mxu0 0
    %737 = vmatmul.mubr.bf16.gmra.mrb[0].mxu0 %v595
    %v738 = vpop.f32.mrb[0].mxu0
    %v739 = vadd.f32 %v617, %v738
    %v740 = vpop.f32.mrb[0].mxu0
    %v741 = vadd.f32 %v621, %v740
    %v742 = vpop.f32.mrb[0].mxu0
    %v743 = vadd.f32 %v617, %v742
    %v744 = vpop.f32.mrb[0].mxu0
    %v745 = vadd.f32 %v621, %v744
    %746 = vdwg.mxu0
    %v747 = vmax.f32 %v739, 0.0
    %v748 = vmax.f32 %v743, 0.0
    %v749 = vpack.c.bf16 %v748, %v747
    %v750 = vld [vmem:[#allocation7] sm:$0xf]
    %v751 = vld [vmem:[#allocation7 + $0x4] sm:$0xf]
    %v752 = vld [vmem:[#allocation7 + $0x8] sm:$0xf]
    %v753 = vld [vmem:[#allocation7 + $0xc] sm:$0xf]
    %v754 = vld [vmem:[#allocation7 + $0x10] sm:$0xf]
    %v755 = vld [vmem:[#allocation7 + $0x14] sm:$0xf]
    %v756 = vld [vmem:[#allocation7 + $0x18] sm:$0xf]
    %v757 = vld [vmem:[#allocation7 + $0x1c] sm:$0xf]
    %v758 = vld [vmem:[#allocation7 + $0x20] sm:$0xf]
    %v759 = vld [vmem:[#allocation7 + $0x24] sm:$0xf]
    %v760 = vld [vmem:[#allocation7 + $0x28] sm:$0xf]
    %v761 = vld [vmem:[#allocation7 + $0x2c] sm:$0xf]
    %v762 = vld [vmem:[#allocation7 + $0x30] sm:$0xf]
    %v763 = vld [vmem:[#allocation7 + $0x34] sm:$0xf]
    %v764 = vld [vmem:[#allocation7 + $0x38] sm:$0xf]
    %v765 = vld [vmem:[#allocation7 + $0x3c] sm:$0xf]
    %v766 = vld [vmem:[%s10] sm:$0x1]
    %v768 = vlaneseq
    %v769 = vshrl.u32 %v768, 7
    %v770 = vsub.s32 0, %v769
    %v771 = vrot.slane %v766, %v770
    %v789 = vunpack.c.l.b16 %v750
    %v790 = vunpack.c.l.b16 %v751
    %v791 = vunpack.c.l.b16 %v752
    %v792 = vunpack.c.l.b16 %v753
    %v793 = vunpack.c.l.b16 %v754
    %v794 = vunpack.c.l.b16 %v755
    %v795 = vunpack.c.l.b16 %v756
    %v796 = vunpack.c.l.b16 %v757
    %v797 = vunpack.c.l.b16 %v758
    %v798 = vunpack.c.l.b16 %v759
    %v799 = vunpack.c.l.b16 %v760
    %v800 = vunpack.c.l.b16 %v761
    %v801 = vunpack.c.l.b16 %v762
    %v802 = vunpack.c.l.b16 %v763
    %v803 = vunpack.c.l.b16 %v764
    %v804 = vunpack.c.l.b16 %v765
    %v805 = vpack.c.b16 %v790, %v789
    %v806 = vpack.c.b16 %v792, %v791
    %v807 = vpack.c.b16 %v794, %v793
    %v808 = vpack.c.b16 %v796, %v795
    %v809 = vpack.c.b16 %v798, %v797
    %v810 = vpack.c.b16 %v800, %v799
    %v811 = vpack.c.b16 %v802, %v801
    %v812 = vpack.c.b16 %v804, %v803
    %821 = vmatprep.subr.bf16.mxu0 0
    %822 = vmatpush1.bf16.msra.mxu0 %v805
    %823 = vmatprep.subr.bf16.mxu0 0
    %824 = vmatpush1.bf16.msra.mxu0 %v806
    %825 = vmatprep.subr.bf16.mxu0 0
    %826 = vmatpush1.bf16.msra.mxu0 %v807
    %827 = vmatprep.subr.bf16.mxu0 0
    %828 = vmatpush1.bf16.msra.mxu0 %v808
    %829 = vmatprep.subr.bf16.mxu0 0
    %830 = vmatpush1.bf16.msra.mxu0 %v809
    %831 = vmatprep.subr.bf16.mxu0 0
    %832 = vmatpush1.bf16.msra.mxu0 %v810
    %833 = vmatprep.subr.bf16.mxu0 0
    %834 = vmatpush1.bf16.msra.mxu0 %v811
    %835 = vmatprep.subr.bf16.mxu0 0
    %836 = vmatpush1.bf16.msra.mxu0 %v812
    %837 = vmatprep.subr.bf16.mxu0 0
    %838 = vmatpush1.bf16.msra.mxu0 0
    %839 = vmatprep.subr.bf16.mxu0 0
    %840 = vmatpush1.bf16.msra.mxu0 0
    %841 = vmatprep.subr.bf16.mxu0 0
    %842 = vmatpush1.bf16.msra.mxu0 0
    %843 = vmatprep.subr.bf16.mxu0 0
    %844 = vmatpush1.bf16.msra.mxu0 0
    %845 = vmatprep.subr.bf16.mxu0 0
    %846 = vmatpush1.bf16.msra.mxu0 0
    %847 = vmatprep.subr.bf16.mxu0 0
    %848 = vmatpush1.bf16.msra.mxu0 0
    %849 = vmatprep.subr.bf16.mxu0 0
    %850 = vmatpush1.bf16.msra.mxu0 0
    %851 = vmatprep.subr.bf16.mxu0 0
    %852 = vmatpush1.bf16.msra.mxu0 0
    %853 = vmatprep.mubr.bf16.mxu0 0
    %854 = vmatmul.mubr.bf16.gmra.mrb[0].mxu0 %v749
    %v855 = vpop.f32.mrb[0].mxu0
    %v856 = vadd.f32 %v771, %v855
    %v857 = vpop.f32.mrb[0].mxu0
    %v858 = vpop.f32.mrb[0].mxu0
    %v859 = vadd.f32 %v771, %v858
    %v860 = vpop.f32.mrb[0].mxu0
    %861 = vdwg.mxu0
    %v862 = vld [vmem:[#allocation10] sm:$0xff]
    %v863 = vld [vmem:[#allocation10 + $0x8] sm:$0xff]
    %v864 = vrot.slane %v741, 4
    %v865 = vadd.f32 %v741, %v864
    %v866 = vrot.slane %v865, 2
    %v867 = vadd.f32 %v865, %v866
    %v868 = vrot.slane %v867, 1
    %v869 = vadd.f32 %v867, %v868
    %v870 = vrot.slane %v745, 4
    %v871 = vadd.f32 %v745, %v870
    %v872 = vrot.slane %v871, 2
    %v873 = vadd.f32 %v871, %v872
    %v874 = vrot.slane %v873, 1
    %v875 = vadd.f32 %v873, %v874
    %876 = vadd.xlane.f32.xlu0 %v869
    %v877 = vpop.xlane.xlu0 %876
    %878 = vadd.xlane.f32.xlu0 %v875
    %v879 = vpop.xlane.xlu0 %878
    %v880 = vmul.f32 %v877, 0.0009765625
    %v881 = vmul.f32 %v879, 0.0009765625
    %v882 = vsub.f32 %v741, %v880
    %v883 = vsub.f32 %v745, %v881
    %v884 = vmul.f32 %v882, %v882
    %v885 = vmul.f32 %v883, %v883
    %v886 = vrot.slane %v884, 4
    %v887 = vadd.f32 %v884, %v886
    %v888 = vrot.slane %v887, 2
    %v889 = vadd.f32 %v887, %v888
    %v890 = vrot.slane %v889, 1
    %v891 = vadd.f32 %v889, %v890
    %v892 = vrot.slane %v885, 4
    %v893 = vadd.f32 %v885, %v892
    %v894 = vrot.slane %v893, 2
    %v895 = vadd.f32 %v893, %v894
    %v896 = vrot.slane %v895, 1
    %v897 = vadd.f32 %v895, %v896
    %898 = vadd.xlane.f32.xlu0 %v891
    %v899 = vpop.xlane.xlu0 %898
    %900 = vadd.xlane.f32.xlu0 %v897
    %v901 = vpop.xlane.xlu0 %900
    %v902 = vmul.f32 %v899, 0.0009765625
    %v903 = vmul.f32 %v901, 0.0009765625
    %v904 = vadd.f32 %v902, 1e-05
    %v905 = vadd.f32 %v903, 1e-05
    %v906 = vrsqrt.pop %v904
    %v907 = vrsqrt.pop %v905
    %v908 = vmul.f32 %v906, %v862
    %v909 = vmul.f32 %v907, %v862
    %v910 = vmul.f32 %v882, %v908
    %v911 = vmul.f32 %v883, %v909
    %v912 = vadd.f32 %v910, %v863
    %v913 = vadd.f32 %v911, %v863
    %v914 = vadd.f32 %v856, %v912
    %v915 = vadd.f32 %v859, %v913
    %916 = vst [vmem:[%s13] sm:$0xff] %v914
    %917 = vst [vmem:[%s13 + $0x8] sm:$0xff] %v915
    // Predicated region
    $region78: #{forward.1} parent=1 // pred_check
      _
    $region79: #{forward.1} parent=1 // pred_check_branch
      %919 = sbr.rel (0) target = $region81
    $region80: #{forward.1} parent=1 // pred_region
      _
    $region81: #{forward.1} parent=1 // pred_fallthru
      _
    // Predicated region
    $region82: #{forward.1} parent=1 // pred_check
      _
    $region83: #{forward.1} parent=1 // pred_check_branch
      %921 = sbr.rel (0) target = $region85
    $region84: #{forward.1} parent=1 // pred_region
      _
    $region85: #{forward.1} parent=1 // pred_fallthru
      _
    %922 = vsyncpa [#allocation3], 1
    %923 = vsyncpa [#allocation5], 1
    %924 = vsyncpa [#allocation8], 1
    %925 = vsyncpa [#allocation11], 1

</llo_original>
